<compile_context>
chip_gen: v6e
topology: v6e:2x2x1
jax: 0.10.0
libtpu: 0.0.40
codegen_flags: <defaults>
</compile_context>

<pallas_src>
import jax
import jax.numpy as jnp
from jax.experimental import pallas as pl
from jax.experimental.pallas import tpu as pltpu

LANE = 128
MIB = 1024 * 1024


def attn_sum_kernel(x_ref, o_ref):
    # x_ref: (TB, N, SUB, 128) VMEM block   (SUB = K // 128, sublane-dense)
    # o_ref: (TB, SUB, 128)    VMEM block
    #
    # softmax over the singleton spatial axis == 1.0, so the module output is
    # exactly the sum over N.  Unroll the N-axis reduction into slice adds so
    # only ~2 lane-tiles are live at a time (no (TB, N, SUB, 128) live
    # intermediate -> no vreg spills at large TB).
    n_total = x_ref.shape[1]
    acc = x_ref[:, 0]
    for n in range(1, n_total):
        acc = acc + x_ref[:, n]
    o_ref[...] = acc


def _tpu_policy():
    """Return (num_tensorcores, vmem_budget_bytes, vmem_limit_bytes) for the
    local chip generation; conservative single-core defaults on failure."""
    kind = ""
    try:
        kind = getattr(jax.devices()[0], "device_kind", "") or ""
    except Exception:
        pass
    k = kind.lower()
    if "v7" in k or "7x" in k:
        # 2 TCs/chip, only 64 MiB physical VMEM -> modest budget, headroom kept.
        return 2, 20 * MIB, 32 * MIB
    if "v6" in k:
        # 1 TC, 128 MiB physical -> fat single-step blocks are cheap.
        return 1, 24 * MIB, 64 * MIB
    if "v5" in k:
        # v5e: 1 TC, 16 MiB default scoped VMEM -> raise the limit modestly.
        return 1, 12 * MIB, 32 * MIB
    return 1, 12 * MIB, 32 * MIB


def _choose_tb(B, N, K, num_cores, vmem_budget_bytes):
    """Batch-block size: target exactly `num_cores` grid steps (1 fat step on
    single-TC v5e/v6e, 2 parallel steps on dual-TC v7x) unless the VMEM
    budget forces more.  per_b counts double-buffered input + output, f32."""
    per_b = (2 * N * K + 2 * K) * 4
    tb_cap = max(1, vmem_budget_bytes // per_b)
    tb_target = pl.cdiv(B, num_cores)
    return int(max(1, min(tb_cap, tb_target)))


def attn_forward(x, conv_w=None, conv_b=None, tb=None):
    """x: (B, N, C, H, W) f32.  conv_w / conv_b are accepted for API parity
    with the PyTorch module but are mathematically dead (softmax over a
    size-1 axis), so the kernel never reads them.  Returns (B, C, H, W)."""
    B, N, C, H, W = x.shape
    K = C * H * W
    assert K % LANE == 0, "C*H*W must be a multiple of 128 for lane packing"
    SUB = K // LANE

    # Free contiguous reshape: pack K into sublane-dense (SUB, 128) tiles.
    x_packed = x.reshape(B, N, SUB, LANE)

    num_cores, vmem_budget, vmem_limit = _tpu_policy()
    if tb is None:
        tb = _choose_tb(B, N, K, num_cores, vmem_budget)
    # Ragged last block is safe: each output row depends only on its own
    # input rows, and Pallas drops out-of-range output rows.
    grid = (pl.cdiv(B, tb),)

    cost = pl.CostEstimate(
        flops=B * N * K,
        transcendentals=0,
        bytes_accessed=4 * (B * N * K + B * K),
    )

    out_packed = pl.pallas_call(
        attn_sum_kernel,
        out_shape=jax.ShapeDtypeStruct((B, SUB, LANE), x.dtype),
        grid=grid,
        in_specs=[
            pl.BlockSpec((tb, N, SUB, LANE), lambda b: (b, 0, 0, 0)),
        ],
        out_specs=pl.BlockSpec((tb, SUB, LANE), lambda b: (b, 0, 0)),
        compiler_params=pltpu.CompilerParams(
            dimension_semantics=("parallel",),
            vmem_limit_bytes=vmem_limit,
        ),
        cost_estimate=cost,
    )(x_packed)

    return out_packed.reshape(B, C, H, W)


def reference(x, conv_w, conv_b):
    # Pure-JAX replica of the full PyTorch forward (conv + softmax path kept)
    # for verification that the reduced kernel matches.
    B, N, C, H, W = x.shape
    xr = x.reshape(B * N, C, H, W)
    s = jnp.einsum('bchw,ochw->bo', xr, conv_w) + conv_b     # conv 4x4 -> 1x1
    w = s.reshape(B, N, -1)
    w = jax.nn.softmax(w, axis=-1)                           # size-1 axis -> 1.0
    w = w.reshape(B, N, 1, 1, 1)
    return (x * w).sum(axis=1)


if __name__ == "__main__":
    key = jax.random.PRNGKey(0)
    kx, kw, kb = jax.random.split(key, 3)

    # C = 512 and H = W = 4 are forced by Conv2d(512, 1, 4) + the
    # `.view(B, N, 1, 1, 1)` in the module.
    B, N, C, H, W = 2, 3, 512, 4, 4
    x = jax.random.normal(kx, (B, N, C, H, W), dtype=jnp.float32)
    conv_w = jax.random.normal(kw, (1, C, 4, 4), dtype=jnp.float32) * 0.02
    conv_b = jax.random.normal(kb, (1,), dtype=jnp.float32) * 0.02

    out = attn_forward(x, conv_w, conv_b)
    out = jax.block_until_ready(out)
    ref = reference(x, conv_w, conv_b)
    assert out.shape == (B, C, H, W), out.shape
    assert jnp.allclose(out, ref, atol=1e-4, rtol=1e-4), "mismatch vs reference"

    # Exercise the ragged (cdiv) grid path: B=3 with tb=2 -> 2 grid steps,
    # last block half-empty; verifies padding never leaks into real rows.
    B2 = 3
    x2 = jax.random.normal(jax.random.PRNGKey(1), (B2, N, C, H, W),
                           dtype=jnp.float32)
    out2 = jax.block_until_ready(attn_forward(x2, conv_w, conv_b, tb=2))
    ref2 = reference(x2, conv_w, conv_b)
    assert out2.shape == (B2, C, H, W), out2.shape
    assert jnp.allclose(out2, ref2, atol=1e-4, rtol=1e-4), "ragged-grid mismatch"

    print("KERNEL_OK")
</pallas_src>

<mosaic_0001>
module attributes {stable_mosaic.version = 11 : i64} {
  func.func @attn_sum_kernel(%arg0: i32, %arg1: memref<2x3x64x128xf32, #tpu.memory_space<vmem>>, %arg2: memref<2x64x128xf32, #tpu.memory_space<vmem>>) attributes {dimension_semantics = [#tpu.dimension_semantics<parallel>], iteration_bounds = array<i64: 1>, scalar_prefetch = 0 : i64, scratch_operands = 0 : i64, tpu.core_type = #tpu.core_type<tc>, window_params = [{transform_indices = @transform_0, window_bounds = array<i64: 2, 3, 64, 128>}, {transform_indices = @transform_1, window_bounds = array<i64: 2, 64, 128>}]} {
    %c0 = arith.constant 0 : index
    %c0_0 = arith.constant 0 : index
    %c0_1 = arith.constant 0 : index
    %c0_2 = arith.constant 0 : index
    %0 = vector.load %arg1[%c0, %c0_0, %c0_1, %c0_2] : memref<2x3x64x128xf32, #tpu.memory_space<vmem>>, vector<2x1x64x128xf32>
    %1 = vector.shape_cast %0 : vector<2x1x64x128xf32> to vector<2x64x128xf32>
    %c0_3 = arith.constant 0 : index
    %c1 = arith.constant 1 : index
    %c0_4 = arith.constant 0 : index
    %c0_5 = arith.constant 0 : index
    %2 = vector.load %arg1[%c0_3, %c1, %c0_4, %c0_5] : memref<2x3x64x128xf32, #tpu.memory_space<vmem>>, vector<2x1x64x128xf32>
    %3 = vector.shape_cast %2 : vector<2x1x64x128xf32> to vector<2x64x128xf32>
    %4 = arith.addf %1, %3 : vector<2x64x128xf32>
    %c0_6 = arith.constant 0 : index
    %c2 = arith.constant 2 : index
    %c0_7 = arith.constant 0 : index
    %c0_8 = arith.constant 0 : index
    %5 = vector.load %arg1[%c0_6, %c2, %c0_7, %c0_8] : memref<2x3x64x128xf32, #tpu.memory_space<vmem>>, vector<2x1x64x128xf32>
    %6 = vector.shape_cast %5 : vector<2x1x64x128xf32> to vector<2x64x128xf32>
    %7 = arith.addf %4, %6 : vector<2x64x128xf32>
    %c0_9 = arith.constant 0 : index
    %c0_10 = arith.constant 0 : index
    %c0_11 = arith.constant 0 : index
    %8 = vector.load %arg2[%c0_9, %c0_10, %c0_11] : memref<2x64x128xf32, #tpu.memory_space<vmem>>, vector<2x64x128xf32>
    tpu.vector_store %arg2[%c0_9, %c0_10, %c0_11], %7 {strides = array<i32>} : memref<2x64x128xf32, #tpu.memory_space<vmem>>, vector<2x64x128xf32>,
    return
  }
  func.func @transform_0(%arg0: i32) -> (i32, i32, i32, i32) {
    %c0_i32 = arith.constant 0 : i32
    %c0_i32_0 = arith.constant 0 : i32
    %c0_i32_1 = arith.constant 0 : i32
    %c0_i32_2 = arith.constant 0 : i32
    return %arg0, %c0_i32, %c0_i32_0, %c0_i32_1 : i32, i32, i32, i32
  }
  func.func @transform_1(%arg0: i32) -> (i32, i32, i32) {
    %c0_i32 = arith.constant 0 : i32
    %c0_i32_0 = arith.constant 0 : i32
    %c0_i32_1 = arith.constant 0 : i32
    return %arg0, %c0_i32, %c0_i32_0 : i32, i32, i32
  }
}

</mosaic_0001>

<llo_original>
// kernel: tpu_custom_call.1
$region0: #{tpu_custom_call.1}
  #allocation0 [shape = 'u32[]', space=smem, size = 0x4, offset = 0x4, fixed_abs, tag = 'smem constant byte address 0x4 - core index']
  #allocation1 [shape = 'u32[144,128]{1,0:T(1,128)}', space=vmem, size = 0x12000, scoped, tag = 'internal scratch']
  %s0 = inlined_call_operand.hbm [shape: f32[2,3,64,128], index: 0, kind: input, shape index: {}]
  %s1 = inlined_call_operand.hbm [shape: f32[2,64,128], index: 1, kind: output, shape index: {}]
  %s2 = sld [smem:[#allocation0]]
  $region18: #{tpu_custom_call.1} parent=0
    _
  %s4 = ssub.s32 1, %s2
  %s5 = scalar_select 0, %s4, %s2
  $region1: #{tpu_custom_call.1} parent=0
    #allocation2 [shape = 'u8[196608]{0}', space=vmem, size = 0x30000, scoped, tag = 'input window, operand 0, single buffered']
    #allocation3 [shape = 's32[1]{0}', space=sflag, size = 0x4, scoped, tag = 'scoped memory for tpu_custom_call.1']
    #allocation4 [shape = 's32[1]{0}', space=sflag, size = 0x4, scoped, tag = 'scoped memory for tpu_custom_call.1']
    #allocation5 [shape = 'u8[65536]{0}', space=vmem, size = 0x10000, scoped, tag = 'output window, operand 0, single buffered']
    %6 = vsyncpa [#allocation3], 0
    %7 = vsyncpa [#allocation4], 0
    // Predicated region
    $region2: #{tpu_custom_call.1} parent=1 // pred_check
      _
    $region3: #{tpu_custom_call.1} parent=1 // pred_check_branch
      %9 = sbr.rel (0) target = $region5
    $region4: #{tpu_custom_call.1} parent=1 // pred_region
      %s11 = ssub.s32 6144, 6144
      %12 = vsyncadd [#allocation3], %s11
      %s13 = sshll.u32 [#allocation2], 4
      %s14 = int_to_ptr.vmem [resolvable:$true] %s13
      %19 = dma.hbm_to_vmem [thread:$0]  %s0, 6144, %s14, [#allocation3], 128, 128, 8
    $region5: #{tpu_custom_call.1} parent=1 // pred_fallthru
      _
    // Predicated region
    $region6: #{tpu_custom_call.1} parent=1 // pred_check
      _
    $region7: #{tpu_custom_call.1} parent=1 // pred_check_branch
      %21 = sbr.rel (0) target = $region9
    $region8: #{tpu_custom_call.1} parent=1 // pred_region
      %22 = dma.done [#allocation3], 6144
    $region9: #{tpu_custom_call.1} parent=1 // pred_fallthru
      _
    %v23 = vld [vmem:[#allocation2] sm:$0xff]
    %v24 = vld [vmem:[#allocation2 + $0x8] sm:$0xff]
    %v25 = vld [vmem:[#allocation2 + $0x10] sm:$0xff]
    %v26 = vld [vmem:[#allocation2 + $0x18] sm:$0xff]
    %v27 = vld [vmem:[#allocation2 + $0x20] sm:$0xff]
    %v28 = vld [vmem:[#allocation2 + $0x28] sm:$0xff]
    %v29 = vld [vmem:[#allocation2 + $0x30] sm:$0xff]
    %v30 = vld [vmem:[#allocation2 + $0x38] sm:$0xff]
    %v31 = vld [vmem:[#allocation2 + $0xc0] sm:$0xff]
    %v32 = vld [vmem:[#allocation2 + $0xc8] sm:$0xff]
    %v33 = vld [vmem:[#allocation2 + $0xd0] sm:$0xff]
    %v34 = vld [vmem:[#allocation2 + $0xd8] sm:$0xff]
    %v35 = vld [vmem:[#allocation2 + $0xe0] sm:$0xff]
    %v36 = vld [vmem:[#allocation2 + $0xe8] sm:$0xff]
    %v37 = vld [vmem:[#allocation2 + $0xf0] sm:$0xff]
    %v38 = vld [vmem:[#allocation2 + $0xf8] sm:$0xff]
    %s39 = scalar_lea.vmem [#allocation2], 64
    %v40 = vld [vmem:[%s39] sm:$0xff]
    %v41 = vld [vmem:[%s39 + $0x8] sm:$0xff]
    %v42 = vld [vmem:[%s39 + $0x10] sm:$0xff]
    %v43 = vld [vmem:[%s39 + $0x18] sm:$0xff]
    %v44 = vld [vmem:[%s39 + $0x20] sm:$0xff]
    %v45 = vld [vmem:[%s39 + $0x28] sm:$0xff]
    %v46 = vld [vmem:[%s39 + $0x30] sm:$0xff]
    %v47 = vld [vmem:[%s39 + $0x38] sm:$0xff]
    %v48 = vld [vmem:[%s39 + $0xc0] sm:$0xff]
    %v49 = vld [vmem:[%s39 + $0xc8] sm:$0xff]
    %v50 = vld [vmem:[%s39 + $0xd0] sm:$0xff]
    %v51 = vld [vmem:[%s39 + $0xd8] sm:$0xff]
    %v52 = vld [vmem:[%s39 + $0xe0] sm:$0xff]
    %v53 = vld [vmem:[%s39 + $0xe8] sm:$0xff]
    %v54 = vld [vmem:[%s39 + $0xf0] sm:$0xff]
    %v55 = vld [vmem:[%s39 + $0xf8] sm:$0xff]
    %v56 = vadd.f32 %v23, %v40
    %v57 = vadd.f32 %v24, %v41
    %v58 = vadd.f32 %v25, %v42
    %v59 = vadd.f32 %v26, %v43
    %v60 = vadd.f32 %v27, %v44
    %v61 = vadd.f32 %v28, %v45
    %v62 = vadd.f32 %v29, %v46
    %v63 = vadd.f32 %v30, %v47
    %v64 = vadd.f32 %v31, %v48
    %v65 = vadd.f32 %v32, %v49
    %v66 = vadd.f32 %v33, %v50
    %v67 = vadd.f32 %v34, %v51
    %v68 = vadd.f32 %v35, %v52
    %v69 = vadd.f32 %v36, %v53
    %v70 = vadd.f32 %v37, %v54
    %v71 = vadd.f32 %v38, %v55
    %s72 = scalar_lea.vmem [#allocation2], 128
    %v73 = vld [vmem:[%s72] sm:$0xff]
    %v74 = vld [vmem:[%s72 + $0x8] sm:$0xff]
    %v75 = vld [vmem:[%s72 + $0x10] sm:$0xff]
    %v76 = vld [vmem:[%s72 + $0x18] sm:$0xff]
    %v77 = vld [vmem:[%s72 + $0x20] sm:$0xff]
    %v78 = vld [vmem:[%s72 + $0x28] sm:$0xff]
    %v79 = vld [vmem:[%s72 + $0x30] sm:$0xff]
    %v80 = vld [vmem:[%s72 + $0x38] sm:$0xff]
    %v81 = vld [vmem:[%s72 + $0xc0] sm:$0xff]
    %v82 = vld [vmem:[%s72 + $0xc8] sm:$0xff]
    %v83 = vld [vmem:[%s72 + $0xd0] sm:$0xff]
    %v84 = vld [vmem:[%s72 + $0xd8] sm:$0xff]
    %v85 = vld [vmem:[%s72 + $0xe0] sm:$0xff]
    %v86 = vld [vmem:[%s72 + $0xe8] sm:$0xff]
    %v87 = vld [vmem:[%s72 + $0xf0] sm:$0xff]
    %v88 = vld [vmem:[%s72 + $0xf8] sm:$0xff]
    %v89 = vadd.f32 %v56, %v73
    %v90 = vadd.f32 %v57, %v74
    %v91 = vadd.f32 %v58, %v75
    %v92 = vadd.f32 %v59, %v76
    %v93 = vadd.f32 %v60, %v77
    %v94 = vadd.f32 %v61, %v78
    %v95 = vadd.f32 %v62, %v79
    %v96 = vadd.f32 %v63, %v80
    %v97 = vadd.f32 %v64, %v81
    %v98 = vadd.f32 %v65, %v82
    %v99 = vadd.f32 %v66, %v83
    %v100 = vadd.f32 %v67, %v84
    %v101 = vadd.f32 %v68, %v85
    %v102 = vadd.f32 %v69, %v86
    %v103 = vadd.f32 %v70, %v87
    %v104 = vadd.f32 %v71, %v88
    %105 = vst [vmem:[#allocation5] sm:$0xff] %v89
    %106 = vst [vmem:[#allocation5 + $0x8] sm:$0xff] %v90
    %107 = vst [vmem:[#allocation5 + $0x10] sm:$0xff] %v91
    %108 = vst [vmem:[#allocation5 + $0x18] sm:$0xff] %v92
    %109 = vst [vmem:[#allocation5 + $0x20] sm:$0xff] %v93
    %110 = vst [vmem:[#allocation5 + $0x28] sm:$0xff] %v94
    %111 = vst [vmem:[#allocation5 + $0x30] sm:$0xff] %v95
    %112 = vst [vmem:[#allocation5 + $0x38] sm:$0xff] %v96
    %113 = vst [vmem:[#allocation5 + $0x40] sm:$0xff] %v97
    %114 = vst [vmem:[#allocation5 + $0x48] sm:$0xff] %v98
    %115 = vst [vmem:[#allocation5 + $0x50] sm:$0xff] %v99
    %116 = vst [vmem:[#allocation5 + $0x58] sm:$0xff] %v100
    %117 = vst [vmem:[#allocation5 + $0x60] sm:$0xff] %v101
    %118 = vst [vmem:[#allocation5 + $0x68] sm:$0xff] %v102
    %119 = vst [vmem:[#allocation5 + $0x70] sm:$0xff] %v103
    %120 = vst [vmem:[#allocation5 + $0x78] sm:$0xff] %v104
    // Predicated region
    $region10: #{tpu_custom_call.1} parent=1 // pred_check
      _
    $region11: #{tpu_custom_call.1} parent=1 // pred_check_branch
      %122 = sbr.rel (0) target = $region13
    $region12: #{tpu_custom_call.1} parent=1 // pred_region
      %s124 = ssub.s32 2048, 2048
      %125 = vsyncadd [#allocation4], %s124
      %s126 = sshll.u32 [#allocation5], 4
      %s127 = int_to_ptr.vmem [resolvable:$true] %s126
      %132 = dma.vmem_to_hbm [thread:$0]  %s127, 2048, %s1, [#allocation4], 128, 128, 8
    $region13: #{tpu_custom_call.1} parent=1 // pred_fallthru
      _
    // Predicated region
    $region14: #{tpu_custom_call.1} parent=1 // pred_check
      _
    $region15: #{tpu_custom_call.1} parent=1 // pred_check_branch
      %134 = sbr.rel (0) target = $region17
    $region16: #{tpu_custom_call.1} parent=1 // pred_region
      %135 = dma.done [#allocation4], 2048
    $region17: #{tpu_custom_call.1} parent=1 // pred_fallthru
      _
    %136 = vsyncpa [#allocation3], 1
    %137 = vsyncpa [#allocation4], 1

</llo_original>
